<compile_context>
chip_gen: v6e
topology: v6e:2x2x1
jax: 0.10.0
libtpu: 0.0.40
codegen_flags: <defaults>
</compile_context>

<pallas_src>
import jax
import jax.numpy as jnp
from jax.experimental import pallas as pl
from jax.experimental.pallas import tpu as pltpu


def _pos_enc_kernel(x_ref, pe_ref, o_ref):
    # x_ref: (bt, tt, D) tile; pe_ref: (1, tt, D) broadcast over the batch tile.
    o_ref[...] = x_ref[...] + pe_ref[...]
    # TODO(synk): dropout with p > 0 (training mode) would need
    # pltpu.prng_seed / pltpu.prng_random_bits; default p = 0.0 is the identity.


def _vmem_limit_bytes() -> int:
    cap = 64 * 1024 * 1024  # conservative fallback (v7x per-TensorCore VMEM)
    try:
        info = pltpu.get_tpu_info()
        cap = int(getattr(info, "vmem_capacity_bytes", cap)) or cap
    except Exception:
        pass
    # ~25% headroom below physical VMEM, capped at a 64 MiB scoped limit:
    #   v7x (64 MiB physical)   -> 48 MiB
    #   v5e/v6e (128 MiB)       -> 64 MiB
    return int(min((3 * cap) // 4, 64 * 1024 * 1024))


def _round_down8(v: int) -> int:
    return max(8, (v // 8) * 8)


def positional_encoding(x: jnp.ndarray, pe: jnp.ndarray, *, use_pallas=None) -> jnp.ndarray:
    """x: (B, T, D); pe: (1, max_len, D). Returns x + pe[:, :T, :]."""
    B, T, D = x.shape
    assert pe.shape[0] == 1 and pe.shape[1] >= T and pe.shape[2] == D

    # Small-size fast path: for tiny inputs the custom-call launch + DMA setup
    # dominates a trivially fusible add; let XLA fuse it with neighbouring ops.
    if use_pallas is None:
        use_pallas = (B * T * D) >= 65536
    if not use_pallas:
        return x + pe[:, :T, :]

    itemsize = jnp.dtype(x.dtype).itemsize
    vmem_limit = _vmem_limit_bytes()
    tile_budget = vmem_limit - (2 << 20)  # headroom for compiler-internal scratch

    # Sequence tiling. The second-minor block dim must be a multiple of 8 or
    # equal the full array extent.  When T % 8 == 0 we can index straight into
    # the full (1, max_len, D) parameter (no slice copy) and, if T*D is huge,
    # shrink tt so even a minimal (8, tt, D) working set fits the budget.
    if T % 8 == 0:
        pe_in = pe
        tt = T
        while tt > 8 and (4 * 8 + 2) * tt * D * itemsize > tile_budget:
            tt = _round_down8(tt // 2)
    else:
        pe_in = pe[:, :T, :]  # tiny one-time copy (T*D elements)
        tt = T

    # Batch (row) tiling: only the x-in and out tiles are double-buffered
    # (divisor 4); pe contributes at most two (1, tt, D) rows.
    blk_row = tt * D * itemsize
    avail = max(tile_budget - 2 * blk_row, 32 * blk_row)
    max_rows = max(8, ((avail // (4 * blk_row)) // 8) * 8)
    bt = B if B <= max_rows else max_rows
    # Give the grid >= 2 parallel steps for larger batches so v7x can shard the
    # batch axis across both TensorCores (one extra cheap step on v5e/v6e).
    if B >= 16:
        bt = min(bt, _round_down8(pl.cdiv(B, 2)))

    grid = (pl.cdiv(B, bt), pl.cdiv(T, tt))
    pe_invariant = grid[1] == 1  # pe block index is constant across the grid

    cost = pl.CostEstimate(
        flops=B * T * D,
        transcendentals=0,
        bytes_accessed=2 * B * T * D * itemsize + T * D * itemsize,
    )

    def _call(pe_pipeline_mode):
        pe_kwargs = {} if pe_pipeline_mode is None else {"pipeline_mode": pe_pipeline_mode}
        return pl.pallas_call(
            _pos_enc_kernel,
            out_shape=jax.ShapeDtypeStruct((B, T, D), x.dtype),
            grid_spec=pltpu.PrefetchScalarGridSpec(
                num_scalar_prefetch=0,
                grid=grid,
                in_specs=[
                    pl.BlockSpec((bt, tt, D), lambda i, j: (i, j, 0)),
                    pl.BlockSpec((1, tt, D), lambda i, j: (0, j, 0), **pe_kwargs),
                ],
                out_specs=pl.BlockSpec((bt, tt, D), lambda i, j: (i, j, 0)),
            ),
            compiler_params=pltpu.CompilerParams(
                dimension_semantics=("parallel", "parallel"),
                vmem_limit_bytes=vmem_limit,
            ),
            # x = x + pe is in-place in the PyTorch module; alias x -> out so
            # XLA can donate the input buffer instead of allocating a new one.
            input_output_aliases={0: 0},
            cost_estimate=cost,
        )(x, pe_in)

    if pe_invariant and hasattr(pl, "Buffered"):
        try:
            return _call(pl.Buffered(1))  # invariant block: skip double-buffer
        except Exception:
            pass  # stricter lowerings: fall back to default buffering
    return _call(None)


if __name__ == "__main__":
    key = jax.random.PRNGKey(0)
    k_x, k_pe, k_x2 = jax.random.split(key, 3)

    # Small shapes consistent with the module: batch=2, seq=8, d_model=32
    B, T, D = 2, 8, 32
    max_len = 601

    x = jax.random.normal(k_x, (B, T, D), dtype=jnp.float32)
    # Deterministic parameter init mirroring nn.init.normal_(std=0.02)
    pe = 0.02 * jax.random.normal(k_pe, (1, max_len, D), dtype=jnp.float32)

    ref = x + pe[:, :T, :]
    out = positional_encoding(x, pe, use_pallas=True)  # force the Pallas path
    out = jax.block_until_ready(out)
    assert out.shape == (B, T, D)
    assert jnp.allclose(out, ref, atol=1e-6, rtol=1e-6), "mismatch vs reference"

    # Exercise the auto-selected, multi-step tiled path (grid split over batch).
    B2, T2, D2 = 64, 16, 128
    x2 = jax.random.normal(k_x2, (B2, T2, D2), dtype=jnp.float32)
    pe2 = 0.02 * jax.random.normal(k_pe, (1, max_len, D2), dtype=jnp.float32)
    ref2 = x2 + pe2[:, :T2, :]
    out2 = jax.block_until_ready(positional_encoding(x2, pe2))
    assert jnp.allclose(out2, ref2, atol=1e-6, rtol=1e-6), "mismatch vs reference (tiled)"

    print("KERNEL_OK")
</pallas_src>

<mosaic_0001>
module attributes {stable_mosaic.version = 11 : i64} {
  func.func @_pos_enc_kernel(%arg0: i32, %arg1: i32, %arg2: memref<2x8x32xf32, #tpu.memory_space<vmem>>, %arg3: memref<1x8x32xf32, #tpu.memory_space<vmem>>, %arg4: memref<2x8x32xf32, #tpu.memory_space<vmem>>) attributes {dimension_semantics = [#tpu.dimension_semantics<parallel>, #tpu.dimension_semantics<parallel>], iteration_bounds = array<i64: 1, 1>, scalar_prefetch = 0 : i64, scratch_operands = 0 : i64, tpu.core_type = #tpu.core_type<tc>, window_params = [{transform_indices = @transform_0, window_bounds = array<i64: 2, 8, 32>}, {pipeline_mode = #tpu.pipeline_mode<synchronous>, transform_indices = @transform_1, window_bounds = array<i64: 1, 8, 32>}, {transform_indices = @transform_2, window_bounds = array<i64: 2, 8, 32>}]} {
    %c0 = arith.constant 0 : index
    %c0_0 = arith.constant 0 : index
    %c0_1 = arith.constant 0 : index
    %0 = vector.load %arg2[%c0, %c0_0, %c0_1] : memref<2x8x32xf32, #tpu.memory_space<vmem>>, vector<2x8x32xf32>
    %c0_2 = arith.constant 0 : index
    %c0_3 = arith.constant 0 : index
    %c0_4 = arith.constant 0 : index
    %1 = vector.load %arg3[%c0_2, %c0_3, %c0_4] : memref<1x8x32xf32, #tpu.memory_space<vmem>>, vector<1x8x32xf32>
    %2 = vector.broadcast %1 : vector<1x8x32xf32> to vector<2x8x32xf32>
    %3 = arith.addf %0, %2 : vector<2x8x32xf32>
    %c0_5 = arith.constant 0 : index
    %c0_6 = arith.constant 0 : index
    %c0_7 = arith.constant 0 : index
    %4 = vector.load %arg4[%c0_5, %c0_6, %c0_7] : memref<2x8x32xf32, #tpu.memory_space<vmem>>, vector<2x8x32xf32>
    tpu.vector_store %arg4[%c0_5, %c0_6, %c0_7], %3 {strides = array<i32>} : memref<2x8x32xf32, #tpu.memory_space<vmem>>, vector<2x8x32xf32>,
    return
  }
  func.func @transform_0(%arg0: i32, %arg1: i32) -> (i32, i32, i32) {
    %c0_i32 = arith.constant 0 : i32
    %c0_i32_0 = arith.constant 0 : i32
    return %arg0, %arg1, %c0_i32 : i32, i32, i32
  }
  func.func @transform_1(%arg0: i32, %arg1: i32) -> (i32, i32, i32) {
    %c0_i32 = arith.constant 0 : i32
    %c0_i32_0 = arith.constant 0 : i32
    %c0_i32_1 = arith.constant 0 : i32
    return %c0_i32, %arg1, %c0_i32_0 : i32, i32, i32
  }
  func.func @transform_2(%arg0: i32, %arg1: i32) -> (i32, i32, i32) {
    %c0_i32 = arith.constant 0 : i32
    %c0_i32_0 = arith.constant 0 : i32
    return %arg0, %arg1, %c0_i32 : i32, i32, i32
  }
}

module attributes {stable_mosaic.version = 11 : i64} {
  func.func @_pos_enc_kernel(%arg0: i32, %arg1: i32, %arg2: memref<2x8x32xf32, #tpu.memory_space<vmem>>, %arg3: memref<1x8x32xf32, #tpu.memory_space<vmem>>, %arg4: memref<2x8x32xf32, #tpu.memory_space<vmem>>) attributes {dimension_semantics = [#tpu.dimension_semantics<parallel>, #tpu.dimension_semantics<parallel>], iteration_bounds = array<i64: 1, 1>, scalar_prefetch = 0 : i64, scratch_operands = 0 : i64, tpu.core_type = #tpu.core_type<tc>, window_params = [{transform_indices = @transform_0, window_bounds = array<i64: 2, 8, 32>}, {transform_indices = @transform_1, window_bounds = array<i64: 1, 8, 32>}, {transform_indices = @transform_2, window_bounds = array<i64: 2, 8, 32>}]} {
    %c0 = arith.constant 0 : index
    %c0_0 = arith.constant 0 : index
    %c0_1 = arith.constant 0 : index
    %0 = vector.load %arg2[%c0, %c0_0, %c0_1] : memref<2x8x32xf32, #tpu.memory_space<vmem>>, vector<2x8x32xf32>
    %c0_2 = arith.constant 0 : index
    %c0_3 = arith.constant 0 : index
    %c0_4 = arith.constant 0 : index
    %1 = vector.load %arg3[%c0_2, %c0_3, %c0_4] : memref<1x8x32xf32, #tpu.memory_space<vmem>>, vector<1x8x32xf32>
    %2 = vector.broadcast %1 : vector<1x8x32xf32> to vector<2x8x32xf32>
    %3 = arith.addf %0, %2 : vector<2x8x32xf32>
    %c0_5 = arith.constant 0 : index
    %c0_6 = arith.constant 0 : index
    %c0_7 = arith.constant 0 : index
    %4 = vector.load %arg4[%c0_5, %c0_6, %c0_7] : memref<2x8x32xf32, #tpu.memory_space<vmem>>, vector<2x8x32xf32>
    tpu.vector_store %arg4[%c0_5, %c0_6, %c0_7], %3 {strides = array<i32>} : memref<2x8x32xf32, #tpu.memory_space<vmem>>, vector<2x8x32xf32>,
    return
  }
  func.func @transform_0(%arg0: i32, %arg1: i32) -> (i32, i32, i32) {
    %c0_i32 = arith.constant 0 : i32
    %c0_i32_0 = arith.constant 0 : i32
    return %arg0, %arg1, %c0_i32 : i32, i32, i32
  }
  func.func @transform_1(%arg0: i32, %arg1: i32) -> (i32, i32, i32) {
    %c0_i32 = arith.constant 0 : i32
    %c0_i32_0 = arith.constant 0 : i32
    %c0_i32_1 = arith.constant 0 : i32
    return %c0_i32, %arg1, %c0_i32_0 : i32, i32, i32
  }
  func.func @transform_2(%arg0: i32, %arg1: i32) -> (i32, i32, i32) {
    %c0_i32 = arith.constant 0 : i32
    %c0_i32_0 = arith.constant 0 : i32
    return %arg0, %arg1, %c0_i32 : i32, i32, i32
  }
}

</mosaic_0001>

<llo_original>
// kernel: tpu_custom_call.1
$region0: #{tpu_custom_call.1}
  #allocation0 [shape = 'u32[]', space=smem, size = 0x4, offset = 0x4, fixed_abs, tag = 'smem constant byte address 0x4 - core index']
  #allocation1 [shape = 'u32[144,128]{1,0:T(1,128)}', space=vmem, size = 0x12000, scoped, tag = 'internal scratch']
  %s0 = inlined_call_operand.hbm [shape: f32[2,8,32], index: 0, kind: input, shape index: {}, may-alias: {0,2}]
  %s1 = inlined_call_operand.vmem [shape: f32[1,601,32], index: 1, kind: input, shape index: {}]
  %s2 = inlined_call_operand.hbm [shape: f32[2,8,32], index: 2, kind: output, shape index: {}, may-alias: {0,2}]
  %s3 = sld [smem:[#allocation0]]
  $region22: #{tpu_custom_call.1} parent=0
    _
  %s5 = ssub.s32 1, %s3
  %s6 = scalar_select 0, %s5, %s3
  $region1: #{tpu_custom_call.1} parent=0
    #allocation2 [shape = 'u8[8192]{0}', space=vmem, size = 0x2000, scoped, tag = 'input window, operand 0, single buffered']
    #allocation3 [shape = 's32[1]{0}', space=sflag, size = 0x4, scoped, tag = 'scoped memory for tpu_custom_call.1']
    #allocation4 [shape = 's32[1]{0}', space=sflag, size = 0x4, scoped, tag = 'scoped memory for tpu_custom_call.1']
    #allocation5 [shape = 'u8[8192]{0}', space=vmem, size = 0x2000, scoped, tag = 'output window, operand 0, single buffered']
    %7 = vsyncpa [#allocation3], 0
    %8 = vsyncpa [#allocation4], 0
    // Predicated region
    $region2: #{tpu_custom_call.1} parent=1 // pred_check
      _
    $region3: #{tpu_custom_call.1} parent=1 // pred_check_branch
      %10 = sbr.rel (0) target = $region5
    $region4: #{tpu_custom_call.1} parent=1 // pred_region
      %s12 = ssub.s32 256, 256
      %13 = vsyncadd [#allocation3], %s12
      %s14 = sshll.u32 [#allocation2], 4
      %s15 = int_to_ptr.vmem [resolvable:$true] %s14
      %20 = dma.hbm_to_vmem [thread:$0]  %s0, 256, %s15, [#allocation3], 128, 128, 8
    $region5: #{tpu_custom_call.1} parent=1 // pred_fallthru
      _
    // Predicated region
    $region6: #{tpu_custom_call.1} parent=1 // pred_check
      _
    $region7: #{tpu_custom_call.1} parent=1 // pred_check_branch
      %22 = sbr.rel (0) target = $region9
    $region8: #{tpu_custom_call.1} parent=1 // pred_region
      _
    $region9: #{tpu_custom_call.1} parent=1 // pred_fallthru
      _
    // Predicated region
    $region10: #{tpu_custom_call.1} parent=1 // pred_check
      _
    $region11: #{tpu_custom_call.1} parent=1 // pred_check_branch
      %24 = sbr.rel (0) target = $region13
    $region12: #{tpu_custom_call.1} parent=1 // pred_region
      %25 = dma.done [#allocation3], 256
    $region13: #{tpu_custom_call.1} parent=1 // pred_fallthru
      _
    %v26 = vld [vmem:[#allocation2] sm:$0xff]
    %v27 = vld [vmem:[#allocation2 + $0x8] sm:$0xff]
    %v28 = vld [vmem:[%s1] sm:$0xff]
    %v29 = vadd.f32 %v26, %v28
    %v30 = vadd.f32 %v27, %v28
    %vm31 = vcmask 261120
    %32 = vst.msk [vmem:[#allocation5] sm:$0xff] %vm31, %v29
    %33 = vst.msk [vmem:[#allocation5 + $0x8] sm:$0xff] %vm31, %v30
    // Predicated region
    $region14: #{tpu_custom_call.1} parent=1 // pred_check
      _
    $region15: #{tpu_custom_call.1} parent=1 // pred_check_branch
      %35 = sbr.rel (0) target = $region17
    $region16: #{tpu_custom_call.1} parent=1 // pred_region
      %s37 = ssub.s32 256, 256
      %38 = vsyncadd [#allocation4], %s37
      %s39 = sshll.u32 [#allocation5], 4
      %s40 = int_to_ptr.vmem [resolvable:$true] %s39
      %45 = dma.vmem_to_hbm [thread:$0]  %s40, 256, %s2, [#allocation4], 128, 128, 8
    $region17: #{tpu_custom_call.1} parent=1 // pred_fallthru
      _
    // Predicated region
    $region18: #{tpu_custom_call.1} parent=1 // pred_check
      _
    $region19: #{tpu_custom_call.1} parent=1 // pred_check_branch
      %47 = sbr.rel (0) target = $region21
    $region20: #{tpu_custom_call.1} parent=1 // pred_region
      %48 = dma.done [#allocation4], 256
    $region21: #{tpu_custom_call.1} parent=1 // pred_fallthru
      _
    %49 = vsyncpa [#allocation3], 1
    %50 = vsyncpa [#allocation4], 1

// kernel: tpu_custom_call.1
$region0: #{tpu_custom_call.1}
  #allocation0 [shape = 'u32[]', space=smem, size = 0x4, offset = 0x4, fixed_abs, tag = 'smem constant byte address 0x4 - core index']
  #allocation1 [shape = 'u32[144,128]{1,0:T(1,128)}', space=vmem, size = 0x12000, scoped, tag = 'internal scratch']
  %s0 = inlined_call_operand.hbm [shape: f32[2,8,32], index: 0, kind: input, shape index: {}, may-alias: {0,2}]
  %s1 = inlined_call_operand.vmem [shape: f32[1,601,32], index: 1, kind: input, shape index: {}]
  %s2 = inlined_call_operand.hbm [shape: f32[2,8,32], index: 2, kind: output, shape index: {}, may-alias: {0,2}]
  %s3 = sld [smem:[#allocation0]]
  $region22: #{tpu_custom_call.1} parent=0
    _
  %s5 = ssub.s32 1, %s3
  %s6 = scalar_select 0, %s5, %s3
  $region1: #{tpu_custom_call.1} parent=0
    #allocation2 [shape = 'u8[8192]{0}', space=vmem, size = 0x2000, scoped, tag = 'input window, operand 0, single buffered']
    #allocation3 [shape = 's32[1]{0}', space=sflag, size = 0x4, scoped, tag = 'scoped memory for tpu_custom_call.1']
    #allocation4 [shape = 's32[1]{0}', space=sflag, size = 0x4, scoped, tag = 'scoped memory for tpu_custom_call.1']
    #allocation5 [shape = 'u8[8192]{0}', space=vmem, size = 0x2000, scoped, tag = 'output window, operand 0, single buffered']
    %7 = vsyncpa [#allocation3], 0
    %8 = vsyncpa [#allocation4], 0
    // Predicated region
    $region2: #{tpu_custom_call.1} parent=1 // pred_check
      _
    $region3: #{tpu_custom_call.1} parent=1 // pred_check_branch
      %10 = sbr.rel (0) target = $region5
    $region4: #{tpu_custom_call.1} parent=1 // pred_region
      %s12 = ssub.s32 256, 256
      %13 = vsyncadd [#allocation3], %s12
      %s14 = sshll.u32 [#allocation2], 4
      %s15 = int_to_ptr.vmem [resolvable:$true] %s14
      %20 = dma.hbm_to_vmem [thread:$0]  %s0, 256, %s15, [#allocation3], 128, 128, 8
    $region5: #{tpu_custom_call.1} parent=1 // pred_fallthru
      _
    // Predicated region
    $region6: #{tpu_custom_call.1} parent=1 // pred_check
      _
    $region7: #{tpu_custom_call.1} parent=1 // pred_check_branch
      %22 = sbr.rel (0) target = $region9
    $region8: #{tpu_custom_call.1} parent=1 // pred_region
      _
    $region9: #{tpu_custom_call.1} parent=1 // pred_fallthru
      _
    // Predicated region
    $region10: #{tpu_custom_call.1} parent=1 // pred_check
      _
    $region11: #{tpu_custom_call.1} parent=1 // pred_check_branch
      %24 = sbr.rel (0) target = $region13
    $region12: #{tpu_custom_call.1} parent=1 // pred_region
      %25 = dma.done [#allocation3], 256
    $region13: #{tpu_custom_call.1} parent=1 // pred_fallthru
      _
    %v26 = vld [vmem:[#allocation2] sm:$0xff]
    %v27 = vld [vmem:[#allocation2 + $0x8] sm:$0xff]
    %v28 = vld [vmem:[%s1] sm:$0xff]
    %v29 = vadd.f32 %v26, %v28
    %v30 = vadd.f32 %v27, %v28
    %vm31 = vcmask 261120
    %32 = vst.msk [vmem:[#allocation5] sm:$0xff] %vm31, %v29
    %33 = vst.msk [vmem:[#allocation5 + $0x8] sm:$0xff] %vm31, %v30
    // Predicated region
    $region14: #{tpu_custom_call.1} parent=1 // pred_check
      _
    $region15: #{tpu_custom_call.1} parent=1 // pred_check_branch
      %35 = sbr.rel (0) target = $region17
    $region16: #{tpu_custom_call.1} parent=1 // pred_region
      %s37 = ssub.s32 256, 256
      %38 = vsyncadd [#allocation4], %s37
      %s39 = sshll.u32 [#allocation5], 4
      %s40 = int_to_ptr.vmem [resolvable:$true] %s39
      %45 = dma.vmem_to_hbm [thread:$0]  %s40, 256, %s2, [#allocation4], 128, 128, 8
    $region17: #{tpu_custom_call.1} parent=1 // pred_fallthru
      _
    // Predicated region
    $region18: #{tpu_custom_call.1} parent=1 // pred_check
      _
    $region19: #{tpu_custom_call.1} parent=1 // pred_check_branch
      %47 = sbr.rel (0) target = $region21
    $region20: #{tpu_custom_call.1} parent=1 // pred_region
      %48 = dma.done [#allocation4], 256
    $region21: #{tpu_custom_call.1} parent=1 // pred_fallthru
      _
    %49 = vsyncpa [#allocation3], 1
    %50 = vsyncpa [#allocation4], 1

</llo_original>
